<compile_context>
chip_gen: v7x
topology: tpu7x:2x2x1
jax: 0.10.0
libtpu: 0.0.40
codegen_flags: <defaults>
</compile_context>

<pallas_src>
import jax
import jax.numpy as jnp
from jax.experimental import pallas as pl
from jax.experimental.pallas import tpu as pltpu

# Conservative single-block budget: well under v7x's 64 MiB physical VMEM
# (the monolithic path keeps q, k, v, o plus f32 logits/probs resident).
_SINGLE_BLOCK_VMEM_BUDGET = 24 * 1024 * 1024


# --------------------------------------------------------------------------
# Path A: whole-array, single invocation (small shapes).
# --------------------------------------------------------------------------
def _sdpa_whole_kernel(q_ref, k_ref, v_ref, o_ref):
    q = q_ref[...]          # native dtype straight to the MXU
    k = k_ref[...]
    v = v_ref[...]

    # qk = input @ weight.transpose(-2, -1)   (the .div(1) no-op is removed)
    s = jnp.einsum("bqd,bkd->bqk", q, k, preferred_element_type=jnp.float32)

    # Numerically-stable softmax over the last dim; elementwise math in f32
    # (v5e VPU/EUP have no bf16 path).
    s = s - jnp.max(s, axis=-1, keepdims=True)
    p = jnp.exp(s)
    inv = pl.reciprocal(jnp.sum(p, axis=-1, keepdims=True), approx=True)

    # dropout_qk: identity at inference time.
    # TODO(synk): training-mode dropout would need pltpu.prng_seed/prng_random_bits.

    # Normalize whichever operand is smaller (static shape decision).
    s_k = k_ref.shape[-2]
    d_v = v_ref.shape[-1]
    if s_k <= d_v:
        # p (B,Sq,Sk) is the smaller tensor: scale it before the second matmul.
        o = jnp.einsum("bqk,bkv->bqv", (p * inv).astype(v.dtype), v,
                       preferred_element_type=jnp.float32)
    else:
        # Output (B,Sq,Dv) is smaller: fold 1/denom into the epilogue.
        o = jnp.einsum("bqk,bkv->bqv", p.astype(v.dtype), v,
                       preferred_element_type=jnp.float32) * inv
    o_ref[...] = o.astype(o_ref.dtype)


def _sdpa_single_block(query, weight, value):
    B, S_q, _ = query.shape
    Dv = value.shape[-1]
    return pl.pallas_call(
        _sdpa_whole_kernel,
        out_shape=jax.ShapeDtypeStruct((B, S_q, Dv), query.dtype),
        in_specs=[pl.BlockSpec(memory_space=pltpu.MemorySpace.VMEM)] * 3,
        out_specs=pl.BlockSpec(memory_space=pltpu.MemorySpace.VMEM),
    )(query, weight, value)


# --------------------------------------------------------------------------
# Path B: flash-style online softmax, tiled over (B, S_q tiles, S_k tiles).
# --------------------------------------------------------------------------
def _sdpa_flash_kernel(q_ref, k_ref, v_ref, o_ref, m_sc, l_sc, acc_sc):
    kv = pl.program_id(2)

    @pl.when(kv == 0)
    def _():
        m_sc[...] = jnp.full(m_sc.shape, -jnp.inf, dtype=m_sc.dtype)
        l_sc[...] = jnp.zeros(l_sc.shape, dtype=l_sc.dtype)
        acc_sc[...] = jnp.zeros(acc_sc.shape, dtype=acc_sc.dtype)

    q = q_ref[...]          # (tq, D)   batch dim squeezed
    k = k_ref[...]          # (tk, D)
    v = v_ref[...]          # (tk, Dv)

    s = jnp.einsum("qd,kd->qk", q, k, preferred_element_type=jnp.float32)

    m_prev = m_sc[...]
    m_new = jnp.maximum(m_prev, jnp.max(s, axis=-1, keepdims=True))
    alpha = jnp.exp(m_prev - m_new)
    p = jnp.exp(s - m_new)

    l_sc[...] = alpha * l_sc[...] + jnp.sum(p, axis=-1, keepdims=True)
    acc_sc[...] = alpha * acc_sc[...] + jnp.einsum(
        "qk,kv->qv", p.astype(v.dtype), v, preferred_element_type=jnp.float32)
    m_sc[...] = m_new

    # dropout_qk: identity at inference time (see TODO above).

    @pl.when(kv == pl.num_programs(2) - 1)
    def _():
        o_ref[...] = (acc_sc[...] *
                      pl.reciprocal(l_sc[...], approx=True)).astype(o_ref.dtype)


def _sdpa_tiled(query, weight, value, *, q_tile=128, k_tile=128):
    B, S_q, D = query.shape
    _, S_k, _ = weight.shape
    Dv = value.shape[-1]

    # Tiles must divide the dims (or fall back to the full extent, which always
    # satisfies the (8, 128) block constraint).
    tq = q_tile if (S_q % q_tile == 0 and q_tile % 8 == 0) else S_q
    tk = k_tile if (S_k % k_tile == 0 and k_tile % 8 == 0) else S_k

    grid = (B, S_q // tq, S_k // tk)
    return pl.pallas_call(
        _sdpa_flash_kernel,
        out_shape=jax.ShapeDtypeStruct((B, S_q, Dv), query.dtype),
        grid=grid,
        in_specs=[
            pl.BlockSpec((None, tq, D), lambda b, i, j: (b, i, 0)),
            pl.BlockSpec((None, tk, D), lambda b, i, j: (b, j, 0)),
            pl.BlockSpec((None, tk, Dv), lambda b, i, j: (b, j, 0)),
        ],
        out_specs=pl.BlockSpec((None, tq, Dv), lambda b, i, j: (b, i, 0)),
        scratch_shapes=[
            pltpu.VMEM((tq, 1), jnp.float32),   # running max
            pltpu.VMEM((tq, 1), jnp.float32),   # running denom
            pltpu.VMEM((tq, Dv), jnp.float32),  # running output accumulator
        ],
        compiler_params=pltpu.CompilerParams(
            # (b, q-tile) axes shard across TensorCores on v7x; S_k is the
            # online-softmax reduction axis and must stay "arbitrary".
            dimension_semantics=("parallel", "parallel", "arbitrary"),
            vmem_limit_bytes=48 * 1024 * 1024,
        ),
    )(query, weight, value)


# --------------------------------------------------------------------------
# Dispatch.
# --------------------------------------------------------------------------
def sdpa(query, weight, value, *, tiled=None, q_tile=128, k_tile=128):
    B, S_q, D = query.shape
    Bk, S_k, Dk = weight.shape
    Bv, S_kv, Dv = value.shape
    assert B == Bk == Bv and D == Dk and S_k == S_kv

    if tiled is None:
        itemsize = query.dtype.itemsize
        io_bytes = itemsize * (query.size + weight.size + value.size + B * S_q * Dv)
        logit_bytes = 2 * 4 * B * S_q * S_k          # f32 logits + probs
        tiled = (io_bytes + logit_bytes) > _SINGLE_BLOCK_VMEM_BUDGET

    if not tiled:
        return _sdpa_single_block(query, weight, value)
    return _sdpa_tiled(query, weight, value, q_tile=q_tile, k_tile=k_tile)


def reference(query, weight, value):
    s = jnp.einsum("bqd,bkd->bqk", query, weight).astype(jnp.float32)
    p = jax.nn.softmax(s, axis=-1)
    return jnp.einsum("bqk,bkv->bqv", p, value.astype(jnp.float32)).astype(query.dtype)


if __name__ == "__main__":
    key0 = jax.random.PRNGKey(0)
    k1, k2, k3, k4, k5, k6 = jax.random.split(key0, 6)

    # Small shapes consistent with the module's forward: batch=2, seq=8, hidden=32.
    B, S_q, S_k, D, Dv = 2, 8, 8, 32, 32
    query = jax.random.normal(k1, (B, S_q, D), dtype=jnp.float32)
    weight = jax.random.normal(k2, (B, S_k, D), dtype=jnp.float32)
    value = jax.random.normal(k3, (B, S_k, Dv), dtype=jnp.float32)

    out = jax.block_until_ready(sdpa(query, weight, value))
    ref = reference(query, weight, value)
    assert out.shape == (B, S_q, Dv)
    # approx reciprocal + MXU default precision -> loose-ish tolerance
    assert jnp.allclose(out, ref, atol=2e-2, rtol=2e-2), "small-path mismatch"

    # Also exercise the tiled / online-softmax path (what auto-dispatch picks once
    # the monolithic design would exceed the v7x VMEM budget).
    B2, Sq2, Sk2, D2, Dv2 = 2, 256, 256, 64, 64
    q2 = jax.random.normal(k4, (B2, Sq2, D2), dtype=jnp.float32) * 0.1
    w2 = jax.random.normal(k5, (B2, Sk2, D2), dtype=jnp.float32)
    v2 = jax.random.normal(k6, (B2, Sk2, Dv2), dtype=jnp.float32)
    out2 = jax.block_until_ready(sdpa(q2, w2, v2, tiled=True))
    ref2 = reference(q2, w2, v2)
    assert out2.shape == (B2, Sq2, Dv2)
    assert jnp.allclose(out2, ref2, atol=2e-2, rtol=2e-2), "tiled-path mismatch"

    print("KERNEL_OK")
</pallas_src>

<mosaic_0001>
module attributes {stable_mosaic.version = 11 : i64} {
  func.func @_sdpa_whole_kernel(%arg0: memref<2x8x32xf32, #tpu.memory_space<vmem>>, %arg1: memref<2x8x32xf32, #tpu.memory_space<vmem>>, %arg2: memref<2x8x32xf32, #tpu.memory_space<vmem>>, %arg3: memref<2x8x32xf32, #tpu.memory_space<vmem>>) attributes {dimension_semantics = [], scalar_prefetch = 0 : i64, scratch_operands = 0 : i64, tpu.core_type = #tpu.core_type<tc>} {
    %c0 = arith.constant 0 : index
    %c0_0 = arith.constant 0 : index
    %c0_1 = arith.constant 0 : index
    %0 = vector.load %arg0[%c0, %c0_0, %c0_1] : memref<2x8x32xf32, #tpu.memory_space<vmem>>, vector<2x8x32xf32>
    %c0_2 = arith.constant 0 : index
    %c0_3 = arith.constant 0 : index
    %c0_4 = arith.constant 0 : index
    %1 = vector.load %arg1[%c0_2, %c0_3, %c0_4] : memref<2x8x32xf32, #tpu.memory_space<vmem>>, vector<2x8x32xf32>
    %c0_5 = arith.constant 0 : index
    %c0_6 = arith.constant 0 : index
    %c0_7 = arith.constant 0 : index
    %2 = vector.load %arg2[%c0_5, %c0_6, %c0_7] : memref<2x8x32xf32, #tpu.memory_space<vmem>>, vector<2x8x32xf32>
    "tpu.trace_start"() <{level = 10 : i32, message = "bqd,bkd->bqk"}> : () -> ()
    %cst = arith.constant dense<0.000000e+00> : vector<2x8x8xf32>
    %3 = tpu.matmul %0, %1, %cst {dimension_numbers = #tpu.dot_dimension_numbers<[2], [2], [1], [1], [0, 0, 0, 1, 1, 1], [0], [0]>} : vector<2x8x32xf32>, vector<2x8x32xf32>, vector<2x8x8xf32> -> vector<2x8x8xf32>
    "tpu.trace_stop"() : () -> ()
    %cst_8 = arith.constant dense<0xFF800000> : vector<2x8xf32>
    %4 = vector.multi_reduction <maximumf>, %3, %cst_8 [2] : vector<2x8x8xf32> to vector<2x8xf32>
    %5 = vector.shape_cast %4 : vector<2x8xf32> to vector<2x8x1xf32>
    %6 = vector.broadcast %5 : vector<2x8x1xf32> to vector<2x8x8xf32>
    %7 = arith.subf %3, %6 : vector<2x8x8xf32>
    %8 = math.exp %7 : vector<2x8x8xf32>
    %cst_9 = arith.constant dense<0.000000e+00> : vector<2x8xf32>
    %9 = vector.multi_reduction <add>, %8, %cst_9 [2] : vector<2x8x8xf32> to vector<2x8xf32>
    %10 = vector.shape_cast %9 : vector<2x8xf32> to vector<2x8x1xf32>
    %11 = tpu.reciprocal %10 {approx = true} : vector<2x8x1xf32> -> vector<2x8x1xf32>
    %12 = vector.broadcast %11 : vector<2x8x1xf32> to vector<2x8x8xf32>
    %13 = arith.mulf %8, %12 : vector<2x8x8xf32>
    "tpu.trace_start"() <{level = 10 : i32, message = "bqk,bkv->bqv"}> : () -> ()
    %cst_10 = arith.constant dense<0.000000e+00> : vector<2x8x32xf32>
    %14 = tpu.matmul %13, %2, %cst_10 {dimension_numbers = #tpu.dot_dimension_numbers<[2], [1], [1], [2], [0, 0, 0, 1, 1, 2], [0], [0]>} : vector<2x8x8xf32>, vector<2x8x32xf32>, vector<2x8x32xf32> -> vector<2x8x32xf32>
    "tpu.trace_stop"() : () -> ()
    %c0_11 = arith.constant 0 : index
    %c0_12 = arith.constant 0 : index
    %c0_13 = arith.constant 0 : index
    %15 = vector.load %arg3[%c0_11, %c0_12, %c0_13] : memref<2x8x32xf32, #tpu.memory_space<vmem>>, vector<2x8x32xf32>
    tpu.vector_store %arg3[%c0_11, %c0_12, %c0_13], %14 {strides = array<i32>} : memref<2x8x32xf32, #tpu.memory_space<vmem>>, vector<2x8x32xf32>,
    return
  }
}

</mosaic_0001>

<llo_original>
// kernel: tpu_custom_call.1
$region0: #{tpu_custom_call.1}
  #allocation0 [shape = 'u32[]', space=smem, size = 0x4, offset = 0x4, fixed_abs, tag = 'smem constant byte address 0x4 - core index']
  #allocation1 [shape = 'u32[144,128]{1,0:T(1,128)}', space=vmem, size = 0x12000, scoped, tag = 'internal scratch']
  %s0 = inlined_call_operand.hbm [shape: f32[2,8,32], index: 0, kind: input, shape index: {}]
  %s1 = inlined_call_operand.hbm [shape: f32[2,8,32], index: 1, kind: input, shape index: {}]
  %s2 = inlined_call_operand.hbm [shape: f32[2,8,32], index: 2, kind: input, shape index: {}]
  %s3 = inlined_call_operand.hbm [shape: f32[2,8,32], index: 3, kind: output, shape index: {}]
  %s4 = sld [smem:[#allocation0]]
  $region34: #{tpu_custom_call.1} parent=0
    _
  %s6 = ssub.s32 1, %s4
  %s7 = scalar_select 0, %s6, %s4
  $region1: #{tpu_custom_call.1} parent=0
    #allocation2 [shape = 'u8[8192]{0}', space=vmem, size = 0x2000, scoped, tag = 'input window, operand 0, single buffered']
    #allocation3 [shape = 's32[1]{0}', space=sflag, size = 0x4, scoped, tag = 'scoped memory for tpu_custom_call.1']
    #allocation4 [shape = 's32[1]{0}', space=sflag, size = 0x4, scoped, tag = 'scoped memory for tpu_custom_call.1']
    #allocation5 [shape = 'u8[8192]{0}', space=vmem, size = 0x2000, scoped, tag = 'input window, operand 1, single buffered']
    #allocation6 [shape = 's32[1]{0}', space=sflag, size = 0x4, scoped, tag = 'scoped memory for tpu_custom_call.1']
    #allocation7 [shape = 'u8[8192]{0}', space=vmem, size = 0x2000, scoped, tag = 'input window, operand 2, single buffered']
    #allocation8 [shape = 'u8[8192]{0}', space=vmem, size = 0x2000, scoped, tag = 'output window, operand 0, single buffered']
    %8 = vsyncpa [#allocation3], 0
    %9 = vsyncpa [#allocation6], 0
    %10 = vsyncpa [#allocation4], 0
    // Predicated region
    $region2: #{tpu_custom_call.1} parent=1 // pred_check
      _
    $region3: #{tpu_custom_call.1} parent=1 // pred_check_branch
      %12 = sbr.rel (0) target = $region5
    $region4: #{tpu_custom_call.1} parent=1 // pred_region
      %s14 = ssub.s32 256, 256
      %15 = vsyncadd [#allocation3], %s14
      %s16 = sshll.u32 [#allocation2], 4
      %s17 = int_to_ptr.vmem [resolvable:$true] %s16
      %22 = dma.hbm_to_vmem [thread:$0]  %s0, 256, %s17, [#allocation3], 128, 128, 8
    $region5: #{tpu_custom_call.1} parent=1 // pred_fallthru
      _
    // Predicated region
    $region6: #{tpu_custom_call.1} parent=1 // pred_check
      _
    $region7: #{tpu_custom_call.1} parent=1 // pred_check_branch
      %24 = sbr.rel (0) target = $region9
    $region8: #{tpu_custom_call.1} parent=1 // pred_region
      %s26 = ssub.s32 256, 256
      %27 = vsyncadd [#allocation6], %s26
      %s28 = sshll.u32 [#allocation5], 4
      %s29 = int_to_ptr.vmem [resolvable:$true] %s28
      %34 = dma.hbm_to_vmem [thread:$0]  %s1, 256, %s29, [#allocation6], 128, 128, 8
    $region9: #{tpu_custom_call.1} parent=1 // pred_fallthru
      _
    // Predicated region
    $region10: #{tpu_custom_call.1} parent=1 // pred_check
      _
    $region11: #{tpu_custom_call.1} parent=1 // pred_check_branch
      %36 = sbr.rel (0) target = $region13
    $region12: #{tpu_custom_call.1} parent=1 // pred_region
      %s38 = ssub.s32 256, 256
      %39 = vsyncadd [#allocation6], %s38
      %s40 = sshll.u32 [#allocation7], 4
      %s41 = int_to_ptr.vmem [resolvable:$true] %s40
      %46 = dma.hbm_to_vmem [thread:$0]  %s2, 256, %s41, [#allocation6], 128, 128, 8
    $region13: #{tpu_custom_call.1} parent=1 // pred_fallthru
      _
    // Predicated region
    $region14: #{tpu_custom_call.1} parent=1 // pred_check
      _
    $region15: #{tpu_custom_call.1} parent=1 // pred_check_branch
      %48 = sbr.rel (0) target = $region17
    $region16: #{tpu_custom_call.1} parent=1 // pred_region
      %49 = dma.done [#allocation3], 256
    $region17: #{tpu_custom_call.1} parent=1 // pred_fallthru
      _
    // Predicated region
    $region18: #{tpu_custom_call.1} parent=1 // pred_check
      _
    $region19: #{tpu_custom_call.1} parent=1 // pred_check_branch
      %51 = sbr.rel (0) target = $region21
    $region20: #{tpu_custom_call.1} parent=1 // pred_region
      %52 = dma.done [#allocation6], 256
    $region21: #{tpu_custom_call.1} parent=1 // pred_fallthru
      _
    // Predicated region
    $region22: #{tpu_custom_call.1} parent=1 // pred_check
      _
    $region23: #{tpu_custom_call.1} parent=1 // pred_check_branch
      %54 = sbr.rel (0) target = $region25
    $region24: #{tpu_custom_call.1} parent=1 // pred_region
      %55 = dma.done [#allocation6], 256
    $region25: #{tpu_custom_call.1} parent=1 // pred_fallthru
      _
    %v56 = vld [vmem:[#allocation2] sm:$0xff]
    %v57 = vld [vmem:[#allocation2 + $0x8] sm:$0xff]
    %v58 = vld [vmem:[#allocation5] sm:$0xff]
    %v59 = vld [vmem:[#allocation5 + $0x8] sm:$0xff]
    %v60 = vld [vmem:[#allocation7] sm:$0xff]
    %v61 = vld [vmem:[#allocation7 + $0x8] sm:$0xff]
    %vm62 = vcmask 261120
    %v64 = vsel %vm62, %v56, 0
    %v67 = vsel %vm62, %v58, 0
    %69 = vmatprep.subr.mxu0 0.0
    %70 = vmatpush1.xpose.msra.mxu0 %v67
    %71 = vmatprep.subr.mxu0 0.0
    %72 = vmatpush1.xpose.msra.mxu0 0.0
    %73 = vmatprep.subr.mxu0 0.0
    %74 = vmatpush1.xpose.msra.mxu0 0.0
    %75 = vmatprep.subr.mxu0 0.0
    %76 = vmatpush1.xpose.msra.mxu0 0.0
    %77 = vmatprep.subr.mxu0 0.0
    %78 = vmatpush1.xpose.msra.mxu0 0.0
    %79 = vmatprep.subr.mxu0 0.0
    %80 = vmatpush1.xpose.msra.mxu0 0.0
    %81 = vmatprep.subr.mxu0 0.0
    %82 = vmatpush1.xpose.msra.mxu0 0.0
    %83 = vmatprep.subr.mxu0 0.0
    %84 = vmatpush1.xpose.msra.mxu0 0.0
    %85 = vmatprep.subr.mxu0 0.0
    %86 = vmatpush1.xpose.msra.mxu0 0.0
    %87 = vmatprep.subr.mxu0 0.0
    %88 = vmatpush1.xpose.msra.mxu0 0.0
    %89 = vmatprep.subr.mxu0 0.0
    %90 = vmatpush1.xpose.msra.mxu0 0.0
    %91 = vmatprep.subr.mxu0 0.0
    %92 = vmatpush1.xpose.msra.mxu0 0.0
    %93 = vmatprep.subr.mxu0 0.0
    %94 = vmatpush1.xpose.msra.mxu0 0.0
    %95 = vmatprep.subr.mxu0 0.0
    %96 = vmatpush1.xpose.msra.mxu0 0.0
    %97 = vmatprep.subr.mxu0 0.0
    %98 = vmatpush1.xpose.msra.mxu0 0.0
    %99 = vmatprep.subr.mxu0 0.0
    %100 = vmatpush1.xpose.msra.mxu0 0.0
    %101 = vmatprep.subr.mxu0 0.0
    %102 = vmatpush1.xpose.msra.mxu0 0.0
    %103 = vmatprep.subr.mxu0 0.0
    %104 = vmatpush1.xpose.msra.mxu0 0.0
    %105 = vmatprep.subr.mxu0 0.0
    %106 = vmatpush1.xpose.msra.mxu0 0.0
    %107 = vmatprep.subr.mxu0 0.0
    %108 = vmatpush1.xpose.msra.mxu0 0.0
    %109 = vmatprep.subr.mxu0 0.0
    %110 = vmatpush1.xpose.msra.mxu0 0.0
    %111 = vmatprep.subr.mxu0 0.0
    %112 = vmatpush1.xpose.msra.mxu0 0.0
    %113 = vmatprep.subr.mxu0 0.0
    %114 = vmatpush1.xpose.msra.mxu0 0.0
    %115 = vmatprep.subr.mxu0 0.0
    %116 = vmatpush1.xpose.msra.mxu0 0.0
    %117 = vmatprep.subr.mxu0 0.0
    %118 = vmatpush1.xpose.msra.mxu0 0.0
    %119 = vmatprep.subr.mxu0 0.0
    %120 = vmatpush1.xpose.msra.mxu0 0.0
    %121 = vmatprep.subr.mxu0 0.0
    %122 = vmatpush1.xpose.msra.mxu0 0.0
    %123 = vmatprep.subr.mxu0 0.0
    %124 = vmatpush1.xpose.msra.mxu0 0.0
    %125 = vmatprep.subr.mxu0 0.0
    %126 = vmatpush1.xpose.msra.mxu0 0.0
    %127 = vmatprep.subr.mxu0 0.0
    %128 = vmatpush1.xpose.msra.mxu0 0.0
    %129 = vmatprep.subr.mxu0 0.0
    %130 = vmatpush1.xpose.msra.mxu0 0.0
    %131 = vmatprep.subr.mxu0 0.0
    %132 = vmatpush1.xpose.msra.mxu0 0.0
    %133 = vmatprep.mubr.f32.mxu0 0.0
    %134 = vmatmul.mubr.f32.gmra.mrb[0].mxu0 %v64
    %v135 = vpop.f32.mrb[0].mxu0
    %v136 = vadd.f32 0.0, %v135
    %v137 = vpop.f32.mrb[0].mxu0
    %138 = vdwg.mxu0
    %v140 = vsel %vm62, %v57, 0
    %v143 = vsel %vm62, %v59, 0
    %145 = vmatprep.subr.mxu0 0.0
    %146 = vmatpush1.xpose.msra.mxu0 %v143
    %147 = vmatprep.subr.mxu0 0.0
    %148 = vmatpush1.xpose.msra.mxu0 0.0
    %149 = vmatprep.subr.mxu0 0.0
    %150 = vmatpush1.xpose.msra.mxu0 0.0
    %151 = vmatprep.subr.mxu0 0.0
    %152 = vmatpush1.xpose.msra.mxu0 0.0
    %153 = vmatprep.subr.mxu0 0.0
    %154 = vmatpush1.xpose.msra.mxu0 0.0
    %155 = vmatprep.subr.mxu0 0.0
    %156 = vmatpush1.xpose.msra.mxu0 0.0
    %157 = vmatprep.subr.mxu0 0.0
    %158 = vmatpush1.xpose.msra.mxu0 0.0
    %159 = vmatprep.subr.mxu0 0.0
    %160 = vmatpush1.xpose.msra.mxu0 0.0
    %161 = vmatprep.subr.mxu0 0.0
    %162 = vmatpush1.xpose.msra.mxu0 0.0
    %163 = vmatprep.subr.mxu0 0.0
    %164 = vmatpush1.xpose.msra.mxu0 0.0
    %165 = vmatprep.subr.mxu0 0.0
    %166 = vmatpush1.xpose.msra.mxu0 0.0
    %167 = vmatprep.subr.mxu0 0.0
    %168 = vmatpush1.xpose.msra.mxu0 0.0
    %169 = vmatprep.subr.mxu0 0.0
    %170 = vmatpush1.xpose.msra.mxu0 0.0
    %171 = vmatprep.subr.mxu0 0.0
    %172 = vmatpush1.xpose.msra.mxu0 0.0
    %173 = vmatprep.subr.mxu0 0.0
    %174 = vmatpush1.xpose.msra.mxu0 0.0
    %175 = vmatprep.subr.mxu0 0.0
    %176 = vmatpush1.xpose.msra.mxu0 0.0
    %177 = vmatprep.subr.mxu0 0.0
    %178 = vmatpush1.xpose.msra.mxu0 0.0
    %179 = vmatprep.subr.mxu0 0.0
    %180 = vmatpush1.xpose.msra.mxu0 0.0
    %181 = vmatprep.subr.mxu0 0.0
    %182 = vmatpush1.xpose.msra.mxu0 0.0
    %183 = vmatprep.subr.mxu0 0.0
    %184 = vmatpush1.xpose.msra.mxu0 0.0
    %185 = vmatprep.subr.mxu0 0.0
    %186 = vmatpush1.xpose.msra.mxu0 0.0
    %187 = vmatprep.subr.mxu0 0.0
    %188 = vmatpush1.xpose.msra.mxu0 0.0
    %189 = vmatprep.subr.mxu0 0.0
    %190 = vmatpush1.xpose.msra.mxu0 0.0
    %191 = vmatprep.subr.mxu0 0.0
    %192 = vmatpush1.xpose.msra.mxu0 0.0
    %193 = vmatprep.subr.mxu0 0.0
    %194 = vmatpush1.xpose.msra.mxu0 0.0
    %195 = vmatprep.subr.mxu0 0.0
    %196 = vmatpush1.xpose.msra.mxu0 0.0
    %197 = vmatprep.subr.mxu0 0.0
    %198 = vmatpush1.xpose.msra.mxu0 0.0
    %199 = vmatprep.subr.mxu0 0.0
    %200 = vmatpush1.xpose.msra.mxu0 0.0
    %201 = vmatprep.subr.mxu0 0.0
    %202 = vmatpush1.xpose.msra.mxu0 0.0
    %203 = vmatprep.subr.mxu0 0.0
    %204 = vmatpush1.xpose.msra.mxu0 0.0
    %205 = vmatprep.subr.mxu0 0.0
    %206 = vmatpush1.xpose.msra.mxu0 0.0
    %207 = vmatprep.subr.mxu0 0.0
    %208 = vmatpush1.xpose.msra.mxu0 0.0
    %209 = vmatprep.mubr.f32.mxu0 0.0
    %210 = vmatmul.mubr.f32.gmra.mrb[0].mxu0 %v140
    %v211 = vpop.f32.mrb[0].mxu0
    %v212 = vadd.f32 0.0, %v211
    %v213 = vpop.f32.mrb[0].mxu0
    %214 = vdwg.mxu0
    %vm215 = vcmask 64512
    %v216 = vsel %vm215, %v136, -inf
    %217 = vmax.xlane.f32.xlu0 %v216
    %v218 = vpop.xlane.xlu0 %217
    %v219 = vsel %vm215, %v212, -inf
    %220 = vmax.xlane.f32.xlu0 %v219
    %v221 = vpop.xlane.xlu0 %220
    %v222 = vsub.f32 %v136, %v218
    %v223 = vsub.f32 %v212, %v221
    %v224 = vmul.f32 %v222, 1.442695
    %v225 = vpow.pop %v224
    %v226 = vmul.f32 %v223, 1.442695
    %v227 = vpow.pop %v226
    %v228 = vsel %vm215, %v225, 0.0
    %229 = vadd.xlane.f32.xlu0 %v228
    %v230 = vpop.xlane.xlu0 %229
    %v231 = vsel %vm215, %v227, 0.0
    %232 = vadd.xlane.f32.xlu0 %v231
    %v233 = vpop.xlane.xlu0 %232
    %v234 = vrcp.pop %v230
    %v235 = vrcp.pop %v233
    %v236 = vmul.f32 %v225, %v234
    %v237 = vmul.f32 %v227, %v235
    %v239 = vsel %vm215, %v236, 0
    %241 = vmatprep.subr.mxu0 0.0
    %242 = vmatpush1.msra.mxu0 %v60
    %243 = vmatprep.subr.mxu0 0.0
    %244 = vmatpush1.msra.mxu0 0.0
    %245 = vmatprep.subr.mxu0 0.0
    %246 = vmatpush1.msra.mxu0 0.0
    %247 = vmatprep.subr.mxu0 0.0
    %248 = vmatpush1.msra.mxu0 0.0
    %249 = vmatprep.subr.mxu0 0.0
    %250 = vmatpush1.msra.mxu0 0.0
    %251 = vmatprep.subr.mxu0 0.0
    %252 = vmatpush1.msra.mxu0 0.0
    %253 = vmatprep.subr.mxu0 0.0
    %254 = vmatpush1.msra.mxu0 0.0
    %255 = vmatprep.subr.mxu0 0.0
    %256 = vmatpush1.msra.mxu0 0.0
    %257 = vmatprep.subr.mxu0 0.0
    %258 = vmatpush1.msra.mxu0 0.0
    %259 = vmatprep.subr.mxu0 0.0
    %260 = vmatpush1.msra.mxu0 0.0
    %261 = vmatprep.subr.mxu0 0.0
    %262 = vmatpush1.msra.mxu0 0.0
    %263 = vmatprep.subr.mxu0 0.0
    %264 = vmatpush1.msra.mxu0 0.0
    %265 = vmatprep.subr.mxu0 0.0
    %266 = vmatpush1.msra.mxu0 0.0
    %267 = vmatprep.subr.mxu0 0.0
    %268 = vmatpush1.msra.mxu0 0.0
    %269 = vmatprep.subr.mxu0 0.0
    %270 = vmatpush1.msra.mxu0 0.0
    %271 = vmatprep.subr.mxu0 0.0
    %272 = vmatpush1.msra.mxu0 0.0
    %273 = vmatprep.subr.mxu0 0.0
    %274 = vmatpush1.msra.mxu0 0.0
    %275 = vmatprep.subr.mxu0 0.0
    %276 = vmatpush1.msra.mxu0 0.0
    %277 = vmatprep.subr.mxu0 0.0
    %278 = vmatpush1.msra.mxu0 0.0
    %279 = vmatprep.subr.mxu0 0.0
    %280 = vmatpush1.msra.mxu0 0.0
    %281 = vmatprep.subr.mxu0 0.0
    %282 = vmatpush1.msra.mxu0 0.0
    %283 = vmatprep.subr.mxu0 0.0
    %284 = vmatpush1.msra.mxu0 0.0
    %285 = vmatprep.subr.mxu0 0.0
    %286 = vmatpush1.msra.mxu0 0.0
    %287 = vmatprep.subr.mxu0 0.0
    %288 = vmatpush1.msra.mxu0 0.0
    %289 = vmatprep.subr.mxu0 0.0
    %290 = vmatpush1.msra.mxu0 0.0
    %291 = vmatprep.subr.mxu0 0.0
    %292 = vmatpush1.msra.mxu0 0.0
    %293 = vmatprep.subr.mxu0 0.0
    %294 = vmatpush1.msra.mxu0 0.0
    %295 = vmatprep.subr.mxu0 0.0
    %296 = vmatpush1.msra.mxu0 0.0
    %297 = vmatprep.subr.mxu0 0.0
    %298 = vmatpush1.msra.mxu0 0.0
    %299 = vmatprep.subr.mxu0 0.0
    %300 = vmatpush1.msra.mxu0 0.0
    %301 = vmatprep.subr.mxu0 0.0
    %302 = vmatpush1.msra.mxu0 0.0
    %303 = vmatprep.subr.mxu0 0.0
    %304 = vmatpush1.msra.mxu0 0.0
    %305 = vmatprep.mubr.f32.mxu0 0.0
    %306 = vmatmul.mubr.f32.gmra.mrb[0].mxu0 %v239
    %v307 = vpop.f32.mrb[0].mxu0
    %v308 = vadd.f32 0.0, %v307
    %v309 = vpop.f32.mrb[0].mxu0
    %310 = vdwg.mxu0
    %v312 = vsel %vm215, %v237, 0
    %314 = vmatprep.subr.mxu0 0.0
    %315 = vmatpush1.msra.mxu0 %v61
    %316 = vmatprep.subr.mxu0 0.0
    %317 = vmatpush1.msra.mxu0 0.0
    %318 = vmatprep.subr.mxu0 0.0
    %319 = vmatpush1.msra.mxu0 0.0
    %320 = vmatprep.subr.mxu0 0.0
    %321 = vmatpush1.msra.mxu0 0.0
    %322 = vmatprep.subr.mxu0 0.0
    %323 = vmatpush1.msra.mxu0 0.0
    %324 = vmatprep.subr.mxu0 0.0
    %325 = vmatpush1.msra.mxu0 0.0
    %326 = vmatprep.subr.mxu0 0.0
    %327 = vmatpush1.msra.mxu0 0.0
    %328 = vmatprep.subr.mxu0 0.0
    %329 = vmatpush1.msra.mxu0 0.0
    %330 = vmatprep.subr.mxu0 0.0
    %331 = vmatpush1.msra.mxu0 0.0
    %332 = vmatprep.subr.mxu0 0.0
    %333 = vmatpush1.msra.mxu0 0.0
    %334 = vmatprep.subr.mxu0 0.0
    %335 = vmatpush1.msra.mxu0 0.0
    %336 = vmatprep.subr.mxu0 0.0
    %337 = vmatpush1.msra.mxu0 0.0
    %338 = vmatprep.subr.mxu0 0.0
    %339 = vmatpush1.msra.mxu0 0.0
    %340 = vmatprep.subr.mxu0 0.0
    %341 = vmatpush1.msra.mxu0 0.0
    %342 = vmatprep.subr.mxu0 0.0
    %343 = vmatpush1.msra.mxu0 0.0
    %344 = vmatprep.subr.mxu0 0.0
    %345 = vmatpush1.msra.mxu0 0.0
    %346 = vmatprep.subr.mxu0 0.0
    %347 = vmatpush1.msra.mxu0 0.0
    %348 = vmatprep.subr.mxu0 0.0
    %349 = vmatpush1.msra.mxu0 0.0
    %350 = vmatprep.subr.mxu0 0.0
    %351 = vmatpush1.msra.mxu0 0.0
    %352 = vmatprep.subr.mxu0 0.0
    %353 = vmatpush1.msra.mxu0 0.0
    %354 = vmatprep.subr.mxu0 0.0
    %355 = vmatpush1.msra.mxu0 0.0
    %356 = vmatprep.subr.mxu0 0.0
    %357 = vmatpush1.msra.mxu0 0.0
    %358 = vmatprep.subr.mxu0 0.0
    %359 = vmatpush1.msra.mxu0 0.0
    %360 = vmatprep.subr.mxu0 0.0
    %361 = vmatpush1.msra.mxu0 0.0
    %362 = vmatprep.subr.mxu0 0.0
    %363 = vmatpush1.msra.mxu0 0.0
    %364 = vmatprep.subr.mxu0 0.0
    %365 = vmatpush1.msra.mxu0 0.0
    %366 = vmatprep.subr.mxu0 0.0
    %367 = vmatpush1.msra.mxu0 0.0
    %368 = vmatprep.subr.mxu0 0.0
    %369 = vmatpush1.msra.mxu0 0.0
    %370 = vmatprep.subr.mxu0 0.0
    %371 = vmatpush1.msra.mxu0 0.0
    %372 = vmatprep.subr.mxu0 0.0
    %373 = vmatpush1.msra.mxu0 0.0
    %374 = vmatprep.subr.mxu0 0.0
    %375 = vmatpush1.msra.mxu0 0.0
    %376 = vmatprep.subr.mxu0 0.0
    %377 = vmatpush1.msra.mxu0 0.0
    %378 = vmatprep.mubr.f32.mxu0 0.0
    %379 = vmatmul.mubr.f32.gmra.mrb[0].mxu0 %v312
    %v380 = vpop.f32.mrb[0].mxu0
    %v381 = vadd.f32 0.0, %v380
    %v382 = vpop.f32.mrb[0].mxu0
    %383 = vdwg.mxu0
    %384 = vst.msk [vmem:[#allocation8] sm:$0xff] %vm62, %v308
    %385 = vst.msk [vmem:[#allocation8 + $0x8] sm:$0xff] %vm62, %v381
    // Predicated region
    $region26: #{tpu_custom_call.1} parent=1 // pred_check
      _
    $region27: #{tpu_custom_call.1} parent=1 // pred_check_branch
      %387 = sbr.rel (0) target = $region29
    $region28: #{tpu_custom_call.1} parent=1 // pred_region
      %s389 = ssub.s32 256, 256
      %390 = vsyncadd [#allocation4], %s389
      %s391 = sshll.u32 [#allocation8], 4
      %s392 = int_to_ptr.vmem [resolvable:$true] %s391
      %397 = dma.vmem_to_hbm [thread:$0]  %s392, 256, %s3, [#allocation4], 128, 128, 8
    $region29: #{tpu_custom_call.1} parent=1 // pred_fallthru
      _
    // Predicated region
    $region30: #{tpu_custom_call.1} parent=1 // pred_check
      _
    $region31: #{tpu_custom_call.1} parent=1 // pred_check_branch
      %399 = sbr.rel (0) target = $region33
    $region32: #{tpu_custom_call.1} parent=1 // pred_region
      %400 = dma.done [#allocation4], 256
    $region33: #{tpu_custom_call.1} parent=1 // pred_fallthru
      _
    %401 = vsyncpa [#allocation3], 1
    %402 = vsyncpa [#allocation6], 1
    %403 = vsyncpa [#allocation4], 1

</llo_original>
